<compile_context>
chip_gen: v5e
topology: v5e:2x2
jax: 0.10.0
libtpu: 0.0.40
codegen_flags: <defaults>
</compile_context>

<pallas_src>
import functools

import numpy as np
import jax
import jax.numpy as jnp
from jax import lax
from jax.experimental import pallas as pl
from jax.experimental.pallas import tpu as pltpu

LAMBDA = 0.1
TAU = 10
N_ACTIONS = 6          # synthetic action-space size (env not available)
P_CODE = 400           # 20*20 LCA code positions per image
P_PAD = 512            # per-image lane count, padded to a multiple of 128
C_CODE = 32            # LCA dictionary size
K_DICT = 8 * 8 * 4     # 256 im2col features of the 8x8x4 dictionary
NEIGH = tuple((dy, dx) for dy in (-1, 0, 1) for dx in (-1, 0, 1))
OFFSETS = tuple(dy * 20 + dx for (dy, dx) in NEIGH)


def _default_vmem_limit():
    """~96 MiB scoped VMEM on v5e/v6e (128 MiB physical); 48 MiB otherwise (v7x has
    64 MiB per TensorCore)."""
    try:
        kind = jax.devices()[0].device_kind.lower()
    except Exception:
        kind = ""
    if ("v5 lite" in kind or "v5e" in kind or "v5litepod" in kind
            or "v6 lite" in kind or "v6e" in kind):
        return 96 * 1024 * 1024
    return 48 * 1024 * 1024


VMEM_LIMIT = _default_vmem_limit()


def _round_up(x, m):
    return ((x + m - 1) // m) * m


def _choose_tm(m):
    if m >= 1024:
        return 512          # measured: 512-wide tiles ~85% of HBM roofline vs ~63% at 256
    if m >= 512:
        return 256
    return _round_up(m, 8)


# ----------------------------------------------------------------------------
# pltpu.roll direction probe (resolved once, outside jit)
# ----------------------------------------------------------------------------
_ROLL_SIGN = []


def _roll_sign():
    """Sign s such that pltpu.roll(x, s*o, axis=-1)[..., l] == x[..., l + o]."""
    if not _ROLL_SIGN:
        def probe(x_ref, o_ref):
            o_ref[...] = pltpu.roll(x_ref[...], 1, axis=1)
        x = jnp.arange(8 * 128, dtype=jnp.float32).reshape(8, 128)
        y = pl.pallas_call(probe, out_shape=jax.ShapeDtypeStruct((8, 128), jnp.float32))(x)
        _ROLL_SIGN.append(-1 if float(y[0, 1]) < 0.5 else 1)   # jnp.roll semantics -> -1
    return _ROLL_SIGN[0]


# ----------------------------------------------------------------------------
# Pallas kernels: conv GEMM, fused FC head, fused conv1 + LCA
# ----------------------------------------------------------------------------
def _matmul_bias_kernel(x_ref, w_ref, b_ref, o_ref, *, relu):
    acc = jnp.dot(x_ref[...], w_ref[...], preferred_element_type=jnp.float32)
    acc = acc + b_ref[...]                       # (1, N) broadcast over rows
    if relu:
        acc = jnp.maximum(acc, 0.0)
    o_ref[...] = acc.astype(o_ref.dtype)


def matmul_bias(x, w, b, relu=False):
    """out = relu?(x @ w + b); bf16 operands on the MXU, f32 accumulate, M-tiled grid."""
    M, K = x.shape
    K2, N = w.shape
    assert K == K2
    x = x.astype(jnp.bfloat16)
    w = w.astype(jnp.bfloat16)
    b2 = b.reshape(1, N).astype(jnp.float32)
    tm = _choose_tm(M)
    Mp = _round_up(M, tm)
    if Mp != M:
        x = jnp.pad(x, ((0, Mp - M), (0, 0)))
    out = pl.pallas_call(
        functools.partial(_matmul_bias_kernel, relu=relu),
        out_shape=jax.ShapeDtypeStruct((Mp, N), jnp.float32),
        grid=(Mp // tm,),
        in_specs=[pl.BlockSpec((tm, K), lambda i: (i, 0)),
                  pl.BlockSpec((K, N), lambda i: (0, 0)),
                  pl.BlockSpec((1, N), lambda i: (0, 0))],
        out_specs=pl.BlockSpec((tm, N), lambda i: (i, 0)),
        compiler_params=pltpu.CompilerParams(
            dimension_semantics=("parallel",),
            vmem_limit_bytes=VMEM_LIMIT),
    )(x, w, b2)
    return out[:M] if Mp != M else out


def _mlp_head_kernel(x_ref, w1_ref, b1_ref, w2_ref, b2_ref, o_ref):
    h = jnp.dot(x_ref[...], w1_ref[...], preferred_element_type=jnp.float32) + b1_ref[...]
    h = jnp.maximum(h, 0.0).astype(w1_ref.dtype)
    q = jnp.dot(h, w2_ref[...], preferred_element_type=jnp.float32) + b2_ref[...]
    o_ref[...] = q


def mlp_head(x, w1, b1, w2, b2):
    """Fused Linear(3136,512)+ReLU+Linear(512,A); hidden never leaves VMEM.  The head
    output is padded to 128 lanes (unmasked stores) and sliced outside."""
    M, K = x.shape
    N1 = w1.shape[1]
    N2 = w2.shape[1]
    N2p = _round_up(N2, 128)
    if N2p != N2:
        w2 = jnp.pad(w2, ((0, 0), (0, N2p - N2)))
        b2 = jnp.pad(b2, ((0, N2p - N2),))
    x = x.astype(jnp.bfloat16)
    w1 = w1.astype(jnp.bfloat16)
    w2 = w2.astype(jnp.bfloat16)
    tm = _choose_tm(M)
    Mp = _round_up(M, tm)
    if Mp != M:
        x = jnp.pad(x, ((0, Mp - M), (0, 0)))
    out = pl.pallas_call(
        _mlp_head_kernel,
        out_shape=jax.ShapeDtypeStruct((Mp, N2p), jnp.float32),
        grid=(Mp // tm,),
        in_specs=[pl.BlockSpec((tm, K), lambda i: (i, 0)),
                  pl.BlockSpec((K, N1), lambda i: (0, 0)),
                  pl.BlockSpec((1, N1), lambda i: (0, 0)),
                  pl.BlockSpec((N1, N2p), lambda i: (0, 0)),
                  pl.BlockSpec((1, N2p), lambda i: (0, 0))],
        out_specs=pl.BlockSpec((tm, N2p), lambda i: (i, 0)),
        compiler_params=pltpu.CompilerParams(
            dimension_semantics=("parallel",),
            vmem_limit_bytes=VMEM_LIMIT),
    )(x, w1, b1.reshape(1, N1).astype(jnp.float32),
      w2, b2.reshape(1, N2p).astype(jnp.float32))
    return out[:M, :N2]


def _lca_kernel(p_ref, w_ref, g_ref, m_ref, o_ref, *, tau, lam, roll_sign, lanes):
    # p_ref: (1, 256, L)  im2col patches of one image, features on sublanes (i,j,c),
    #                     code positions lane-dense (400 valid + zero padding).
    # w_ref: (32, 256)    dictionary as a GEMM (f32).
    # g_ref: (9*32, 32)   stacked Gram matrices: rows k*32+m hold G_{d_k}[m, :].
    # m_ref: (9, 1, L)    {0,1} boundary/pad masks per 3x3 code-space offset.
    # Drive conv fused in, f32 on the MXU (correctness: drive feeds a 10-step
    # fixed point with a soft threshold).
    b = jnp.dot(w_ref[...], p_ref[0], preferred_element_type=jnp.float32)   # (32, L)
    g = g_ref[...]
    C = b.shape[0]
    # Hoist loop-invariant masks; broadcast to (C, L) once, not 9x per iteration.
    masks = [jnp.broadcast_to(m_ref[k], (C, lanes)) for k in range(9)]

    def body(_, carry):
        u, a = carry
        # One fused MXU call for all nine Gram transforms (lane-dense N = L).
        t = jnp.dot(g, a, preferred_element_type=jnp.float32)               # (9*C, L)
        inh = -a                                                             # the "- a" term
        for k, off in enumerate(OFFSETS):
            tk = t[k * C:(k + 1) * C, :]                                     # aligned rows
            if off != 0:
                # shifted[:, l] = tk[:, l + off]; wrap-arounds are killed by the mask.
                tk = pltpu.roll(tk, (roll_sign * off) % lanes, axis=1)
            inh = inh + tk * masks[k]
        u = u + 0.1 * (b - u - inh)
        a = jnp.maximum(u - lam, 0.0) - jnp.maximum(-u - lam, 0.0)           # soft threshold
        return u, a

    zero = jnp.zeros_like(b)
    _, a = lax.fori_loop(0, tau, body, (zero, zero), unroll=2)
    # Fuse the nn.ReLU() that immediately follows LCALayer in the Sequential.
    o_ref[0] = jnp.maximum(a, 0.0)


def lca_forward(patches_T, w1t, gram_stack, masks, roll_sign, tau=TAU, lam=LAMBDA):
    """Fused conv1-drive + LCA fixed point.  Grid is one image per step so the
    'parallel' axis pipelines and shards across TensorCores even at small batch."""
    B, K, L = patches_T.shape
    C = C_CODE
    return pl.pallas_call(
        functools.partial(_lca_kernel, tau=tau, lam=lam, roll_sign=roll_sign, lanes=L),
        out_shape=jax.ShapeDtypeStruct((B, C, L), jnp.float32),
        grid=(B,),
        in_specs=[pl.BlockSpec((1, K, L), lambda i: (i, 0, 0)),
                  pl.BlockSpec((C, K), lambda i: (0, 0)),
                  pl.BlockSpec((9 * C, C), lambda i: (0, 0)),
                  pl.BlockSpec((9, 1, L), lambda i: (0, 0, 0))],
        out_specs=pl.BlockSpec((1, C, L), lambda i: (i, 0, 0)),
        compiler_params=pltpu.CompilerParams(
            dimension_semantics=("parallel",),
            vmem_limit_bytes=VMEM_LIMIT),
    )(patches_T.astype(jnp.float32), w1t.astype(jnp.float32),
      gram_stack.astype(jnp.float32), masks.astype(jnp.float32))


# ----------------------------------------------------------------------------
# Plain-JAX glue: im2col, Gram/mask construction, layout plumbing, init
# ----------------------------------------------------------------------------
def im2col(x, kh, kw, stride):
    """x: (B, H, W, C) NHWC -> (B, Ho*Wo, kh*kw*C); feature order (kh, kw, C)."""
    B, H, W, C = x.shape
    Ho = (H - kh) // stride + 1
    Wo = (W - kw) // stride + 1
    cols = []
    for i in range(kh):
        for j in range(kw):
            cols.append(x[:, i:i + stride * Ho:stride, j:j + stride * Wo:stride, :])
    p = jnp.stack(cols, axis=3)                  # (B, Ho, Wo, kh*kw, C)
    return p.reshape(B, Ho * Wo, kh * kw * C), Ho, Wo


def conv2d_pallas(x, w_oikk, bias, stride, relu):
    """Valid conv (padding=0), NHWC input, PyTorch (O, I, kh, kw) weight."""
    O, I, kh, kw = w_oikk.shape
    x = x.astype(jnp.bfloat16)                   # bf16 patches halve im2col HBM traffic
    patches, Ho, Wo = im2col(x, kh, kw, stride)
    B, P, K = patches.shape
    wmat = jnp.transpose(w_oikk, (2, 3, 1, 0)).reshape(kh * kw * I, O)
    out = matmul_bias(patches.reshape(B * P, K), wmat, bias, relu=relu)
    return out.reshape(B, Ho, Wo, O)


def conv1_patches_T(x_nchw):
    """(B, 4, 84, 84) NCHW -> (B, 256, 512) transposed im2col patches for the LCA drive:
    features (i, j, c) on sublanes, positions y*20+x lane-dense, lanes 400..511 zero."""
    B = x_nchw.shape[0]
    cols = []
    for i in range(8):
        for j in range(8):
            cols.append(x_nchw[:, :, i:i + 4 * 20:4, j:j + 4 * 20:4])   # (B, 4, 20, 20)
    p = jnp.stack(cols, axis=1)                  # (B, 64, 4, 20, 20): (b, ij, c, y, x)
    p = p.reshape(B, K_DICT, P_CODE)
    return jnp.pad(p, ((0, 0), (0, 0), (0, P_PAD - P_CODE)))


def lca_to_nhwc(a_cm, B):
    """(B, 32, 512) channel-major LCA output -> (B, 20, 20, 32) NHWC code map."""
    t = jnp.transpose(a_cm[:, :, :P_CODE], (0, 2, 1))
    return t.reshape(B, 20, 20, C_CODE)


def build_gram_stack(D, stride):
    """(9*O, O) stack; rows k*O+m hold G_{d_k}[m, :], the exact code-space kernel of
    conv2d(conv_transpose2d(a, D, s), D, s):  G_d[m, n] = sum_{c,j} D[m,c,j] D[n,c,j-s*d]."""
    k = D.shape[2]
    hi = jax.lax.Precision.HIGHEST
    mats = []
    for dy, dx in NEIGH:
        y0, y1 = max(0, stride * dy), min(k, k + stride * dy)
        x0, x1 = max(0, stride * dx), min(k, k + stride * dx)
        A = D[:, :, y0:y1, x0:x1]
        Bm = D[:, :, y0 - stride * dy:y1 - stride * dy,
                     x0 - stride * dx:x1 - stride * dx]
        mats.append(jnp.einsum('mcij,ncij->mn', A, Bm, precision=hi))
    return jnp.concatenate(mats, axis=0).astype(jnp.float32)


def build_masks():
    """(9, 1, 512) {0,1} masks: valid 20x20 geometry per offset, zero on lane padding."""
    m = np.zeros((9, P_PAD), np.float32)
    for k, (dy, dx) in enumerate(NEIGH):
        for y in range(20):
            for x in range(20):
                if 0 <= y + dy < 20 and 0 <= x + dx < 20:
                    m[k, y * 20 + x] = 1.0
    return jnp.asarray(m[:, None, :])


def init_params(key):
    ks = jax.random.split(key, 8)
    # LCA dictionary, normalized per filter exactly like the PyTorch __init__.
    D = jax.random.normal(ks[0], (C_CODE, 4, 8, 8), jnp.float32)
    norm = jnp.sqrt(jnp.sum(D.reshape(C_CODE, -1) ** 2, axis=1))
    D = D / norm[:, None, None, None]
    # Linear(3136, 512) consumes a PyTorch NCHW flatten; permute its rows once so our
    # NHWC flatten feeds it directly (no activation transpose at runtime).
    w_fc1 = jax.random.normal(ks[5], (3136, 512), jnp.float32) * 0.02
    perm = np.arange(3136).reshape(64, 7, 7).transpose(1, 2, 0).reshape(-1)
    return dict(
        dict_=D,
        # Dictionary as a GEMM, feature order (kh, kw, c) matching conv1_patches_T.
        w1t=jnp.transpose(D, (0, 2, 3, 1)).reshape(C_CODE, K_DICT),
        gram=build_gram_stack(D, stride=4),
        lca_masks=build_masks(),
        w2=jax.random.normal(ks[1], (64, 32, 4, 4), jnp.float32) * 0.05,
        b2=jax.random.normal(ks[2], (64,), jnp.float32) * 0.01,
        w3=jax.random.normal(ks[3], (64, 64, 3, 3), jnp.float32) * 0.05,
        b3=jax.random.normal(ks[4], (64,), jnp.float32) * 0.01,
        w_fc1=w_fc1[perm, :],          # kernel path (NHWC flatten)
        w_fc1_nchw=w_fc1,              # reference path only (NCHW flatten)
        b_fc1=jnp.zeros((512,), jnp.float32),
        w_fc2=jax.random.normal(ks[6], (512, N_ACTIONS), jnp.float32) * 0.02,
        b_fc2=jnp.zeros((N_ACTIONS,), jnp.float32),
    )


# ----------------------------------------------------------------------------
# QNetwork forward
# ----------------------------------------------------------------------------
def qnetwork_forward(params, x_nchw):
    B = x_nchw.shape[0]
    # conv1 im2col straight from NCHW (no NHWC transpose of the input needed); the
    # drive GEMM itself is fused into the LCA kernel and stays f32.
    p_T = conv1_patches_T(x_nchw.astype(jnp.float32))                      # (B, 256, 512)
    a_cm = lca_forward(p_T, params['w1t'], params['gram'],
                       params['lca_masks'], _roll_sign())                  # (B, 32, 512)
    a = lca_to_nhwc(a_cm, B)                                               # ReLU fused in kernel

    h = conv2d_pallas(a, params['w2'], params['b2'], stride=2, relu=True)  # (B, 9, 9, 64)
    h = conv2d_pallas(h, params['w3'], params['b3'], stride=1, relu=True)  # (B, 7, 7, 64)
    h = h.reshape(B, -1)                                                   # NHWC flatten
    return mlp_head(h, params['w_fc1'], params['b_fc1'],
                    params['w_fc2'], params['b_fc2'])                      # (B, N_ACTIONS)


# ----------------------------------------------------------------------------
# Plain-JAX references (dense LCA, lax.conv forward) — validation only
# ----------------------------------------------------------------------------
def _build_shift_mats(Ho, Wo):
    S = np.zeros((9, Ho * Wo, Ho * Wo), np.float32)
    for k, (dy, dx) in enumerate(NEIGH):
        for y in range(Ho):
            for x in range(Wo):
                py, px = y + dy, x + dx
                if 0 <= py < Ho and 0 <= px < Wo:
                    S[k, y * Wo + x, py * Wo + px] = 1.0
    return jnp.asarray(S)


def lca_reference(b_rows, gram_stack, tau=TAU, lam=LAMBDA):
    S = _build_shift_mats(20, 20)
    G = gram_stack.reshape(9, C_CODE, C_CODE)
    hi = jax.lax.Precision.HIGHEST
    u = jnp.zeros_like(b_rows)
    a = jnp.zeros_like(b_rows)
    for _ in range(tau):
        t = jnp.einsum('bpn,kmn->kbpm', a, G, precision=hi)
        inh = jnp.einsum('kqp,kbpm->bqm', S, t, precision=hi) - a
        u = u + 0.1 * (b_rows - u - inh)
        a = jnp.maximum(u - lam, 0.0) - jnp.maximum(-u - lam, 0.0)
    return jnp.maximum(a, 0.0)


def reference_forward(params, x_nchw):
    """Full-precision plain-JAX forward (PyTorch semantics) for end-to-end validation."""
    hi = jax.lax.Precision.HIGHEST
    dn = ('NCHW', 'OIHW', 'NCHW')
    x = x_nchw.astype(jnp.float32)
    B = x.shape[0]
    b = lax.conv_general_dilated(x, params['dict_'], (4, 4), 'VALID',
                                 dimension_numbers=dn, precision=hi)        # (B, 32, 20, 20)
    b_rows = jnp.transpose(b.reshape(B, C_CODE, P_CODE), (0, 2, 1))
    a_rows = lca_reference(b_rows, params['gram'])                          # post-ReLU
    a = jnp.transpose(a_rows, (0, 2, 1)).reshape(B, C_CODE, 20, 20)
    h = lax.conv_general_dilated(a, params['w2'], (2, 2), 'VALID',
                                 dimension_numbers=dn, precision=hi)
    h = jnp.maximum(h + params['b2'][None, :, None, None], 0.0)
    h = lax.conv_general_dilated(h, params['w3'], (1, 1), 'VALID',
                                 dimension_numbers=dn, precision=hi)
    h = jnp.maximum(h + params['b3'][None, :, None, None], 0.0)
    h = h.reshape(B, -1)                                                    # NCHW flatten
    h = jnp.maximum(jnp.dot(h, params['w_fc1_nchw'], precision=hi) + params['b_fc1'], 0.0)
    return jnp.dot(h, params['w_fc2'], precision=hi) + params['b_fc2']


if __name__ == "__main__":
    key = jax.random.PRNGKey(0)
    pkey, xkey = jax.random.split(key)
    params = init_params(pkey)
    # 84x84 input is what the Linear(3136, 512) in the module implies; batch kept small.
    x = jax.random.normal(xkey, (2, 4, 84, 84), jnp.float32)
    B = x.shape[0]

    _roll_sign()   # resolve the pltpu.roll direction once, outside jit

    # Validate the fused conv1+LCA kernel against the dense plain-JAX reference.
    hi = jax.lax.Precision.HIGHEST
    p_T = conv1_patches_T(x)
    b_ref_rows = jnp.einsum('bfp,mf->bpm', p_T[:, :, :P_CODE], params['w1t'], precision=hi)
    a_ref = lca_reference(b_ref_rows, params['gram'])
    a_ker = lca_forward(p_T, params['w1t'], params['gram'], params['lca_masks'], _roll_sign())
    a_ker_rows = jnp.transpose(a_ker[:, :, :P_CODE], (0, 2, 1))
    err = float(jnp.max(jnp.abs(a_ker_rows - a_ref)))
    assert err < 5e-2, f"LCA kernel mismatch vs reference: max abs err = {err}"

    # End-to-end check of the full forward (im2col ordering, w_fc1 permutation, biases).
    q = jax.jit(qnetwork_forward)(params, x)
    q = jax.block_until_ready(q)
    q_ref = reference_forward(params, x)
    scale = float(jnp.max(jnp.abs(q_ref)))
    e2e = float(jnp.max(jnp.abs(q - q_ref)))
    assert e2e < 5e-2 * (1.0 + scale), f"forward mismatch: max abs err = {e2e} (scale {scale})"

    assert q.shape == (B, N_ACTIONS) and q.dtype == jnp.float32
    assert bool(jnp.all(jnp.isfinite(q)))
    print("KERNEL_OK")
</pallas_src>

<mosaic_0001>
module attributes {stable_mosaic.version = 11 : i64} {
  func.func @probe(%arg0: memref<8x128xf32, #tpu.memory_space<vmem>>, %arg1: memref<8x128xf32, #tpu.memory_space<vmem>>) attributes {dimension_semantics = [], scalar_prefetch = 0 : i64, scratch_operands = 0 : i64, tpu.core_type = #tpu.core_type<tc>} {
    %c0 = arith.constant 0 : index
    %c0_0 = arith.constant 0 : index
    %0 = vector.load %arg0[%c0, %c0_0] : memref<8x128xf32, #tpu.memory_space<vmem>>, vector<8x128xf32>
    %c1_i32 = arith.constant 1 : i32
    %1 = tpu.dynamic_rotate %0 by %c1_i32 dim 1 : vector<8x128xf32>, i32 -> vector<8x128xf32>
    %c0_1 = arith.constant 0 : index
    %c0_2 = arith.constant 0 : index
    %2 = vector.load %arg1[%c0_1, %c0_2] : memref<8x128xf32, #tpu.memory_space<vmem>>, vector<8x128xf32>
    tpu.vector_store %arg1[%c0_1, %c0_2], %1 {strides = array<i32>} : memref<8x128xf32, #tpu.memory_space<vmem>>, vector<8x128xf32>,
    return
  }
}

</mosaic_0001>

<llo_original>
// kernel: tpu_custom_call.1
$region0: #{tpu_custom_call.1}
  #allocation0 [shape = 'u32[]', space=smem, size = 0x4, offset = 0x4, fixed_abs, tag = 'smem constant byte address 0x4 - core index']
  #allocation1 [shape = 'u32[72,128]{1,0:T(1,128)}', space=vmem, size = 0x9000, scoped, tag = 'internal scratch']
  %s0 = inlined_call_operand.hbm [shape: f32[8,128], index: 0, kind: input, shape index: {}]
  %s1 = inlined_call_operand.hbm [shape: f32[8,128], index: 1, kind: output, shape index: {}]
  %s2 = sld [smem:[#allocation0]]
  $region18: #{tpu_custom_call.1} parent=0
    _
  %s4 = ssub.s32 1, %s2
  %s5 = scalar_select 0, %s4, %s2
  $region1: #{tpu_custom_call.1} parent=0
    #allocation2 [shape = 'u8[4096]{0}', space=vmem, size = 0x1000, scoped, tag = 'input window, operand 0, single buffered']
    #allocation3 [shape = 's32[1]{0}', space=sflag, size = 0x4, scoped, tag = 'scoped memory for tpu_custom_call.1']
    #allocation4 [shape = 's32[1]{0}', space=sflag, size = 0x4, scoped, tag = 'scoped memory for tpu_custom_call.1']
    #allocation5 [shape = 'u8[4096]{0}', space=vmem, size = 0x1000, scoped, tag = 'output window, operand 0, single buffered']
    %6 = vsyncpa [#allocation3], 0
    %7 = vsyncpa [#allocation4], 0
    // Predicated region
    $region2: #{tpu_custom_call.1} parent=1 // pred_check
      _
    $region3: #{tpu_custom_call.1} parent=1 // pred_check_branch
      %9 = sbr.rel (0) target = $region5
    $region4: #{tpu_custom_call.1} parent=1 // pred_region
      %11 = vsyncadd [#allocation3], 0
      %s13 = sshll.u32 %s0, 4
      %s14 = int_to_ptr.hbm [resolvable:$true] %s13
      %s15 = sshll.u32 [#allocation2], 4
      %s16 = int_to_ptr.vmem [resolvable:$true] %s15
      %18 = dma.hbm_to_vmem [thread:$0]  %s14, 128, %s16, [#allocation3]
    $region5: #{tpu_custom_call.1} parent=1 // pred_fallthru
      _
    // Predicated region
    $region6: #{tpu_custom_call.1} parent=1 // pred_check
      _
    $region7: #{tpu_custom_call.1} parent=1 // pred_check_branch
      %20 = sbr.rel (0) target = $region9
    $region8: #{tpu_custom_call.1} parent=1 // pred_region
      %22 = dma.done [#allocation3], 128
    $region9: #{tpu_custom_call.1} parent=1 // pred_fallthru
      _
    %v23 = vld [vmem:[#allocation2] sm:$0xff]
    %24 = vrot.lane.b32.xlu0 %v23, 1
    %v25 = vpop.permute.xlu0 %24
    %26 = vst [vmem:[#allocation5] sm:$0xff] %v25
    // Predicated region
    $region10: #{tpu_custom_call.1} parent=1 // pred_check
      _
    $region11: #{tpu_custom_call.1} parent=1 // pred_check_branch
      %28 = sbr.rel (0) target = $region13
    $region12: #{tpu_custom_call.1} parent=1 // pred_region
      %30 = vsyncadd [#allocation4], 0
      %s32 = sshll.u32 [#allocation5], 4
      %s33 = int_to_ptr.vmem [resolvable:$true] %s32
      %s34 = sshll.u32 %s1, 4
      %s35 = int_to_ptr.hbm [resolvable:$true] %s34
      %37 = dma.vmem_to_hbm [thread:$0]  %s33, 128, %s35, [#allocation4]
    $region13: #{tpu_custom_call.1} parent=1 // pred_fallthru
      _
    // Predicated region
    $region14: #{tpu_custom_call.1} parent=1 // pred_check
      _
    $region15: #{tpu_custom_call.1} parent=1 // pred_check_branch
      %39 = sbr.rel (0) target = $region17
    $region16: #{tpu_custom_call.1} parent=1 // pred_region
      %41 = dma.done [#allocation4], 128
    $region17: #{tpu_custom_call.1} parent=1 // pred_fallthru
      _
    %42 = vsyncpa [#allocation3], 1
    %43 = vsyncpa [#allocation4], 1

</llo_original>
